<compile_context>
chip_gen: v7x
topology: tpu7x:2x2x1
jax: 0.10.0
libtpu: 0.0.40
codegen_flags: <defaults>
</compile_context>

<pallas_src>
import functools

import jax
import jax.numpy as jnp
from jax.experimental import pallas as pl
from jax.experimental.pallas import tpu as pltpu


def _round_up(x, m):
    return (x + m - 1) // m * m


def _mtl_kernel(logits_ref, labels_ref, dpred_ref, dtrue_ref,
                count_ref, diff_ref, depcls_ref, *, hw):
    """One (batch, split, pixel-tile) grid step.

    logits_ref: (C, TS, 128)   class logits for TS*128 pixels
    labels_ref: (TS, 128)      int class labels
    dpred_ref / dtrue_ref: (TS, 128) depths
    count/diff/depcls_ref: (C, FOLD, 128) resident per-class accumulators
    """
    p_id = pl.program_id(1)            # split index
    t_id = pl.program_id(2)            # pixel-tile index within the split
    t_per = pl.num_programs(2)

    @pl.when(t_id == 0)
    def _():
        count_ref[...] = jnp.zeros(count_ref.shape, count_ref.dtype)
        diff_ref[...] = jnp.zeros(diff_ref.shape, diff_ref.dtype)
        depcls_ref[...] = jnp.zeros(depcls_ref.shape, depcls_ref.dtype)

    c, ts, lanes = logits_ref.shape
    fold = count_ref.shape[1]

    labels = labels_ref[...]
    if labels.dtype != jnp.int32:
        labels = labels.astype(jnp.int32)

    # Global (unclamped) tile index -> valid-pixel mask.  Covers the ragged
    # tail of the image, any lane padding, the partial last block, and the
    # duplicated (clamped) grid steps of the 2-way core split.
    g = p_id * t_per + t_id
    row = g * ts + jax.lax.broadcasted_iota(jnp.int32, (ts, lanes), 0)
    lane = jax.lax.broadcasted_iota(jnp.int32, (ts, lanes), 1)
    valid = (row * lanes + lane) < hw                      # (TS, 128) bool

    # ---- single pass over classes: running max, first-argmax, true logit ----
    x0 = logits_ref[0].astype(jnp.float32)                 # (TS, 128)
    row_max = x0
    amax = jnp.zeros((ts, lanes), jnp.int32)
    true_logit = jnp.where(labels == 0, x0, jnp.zeros_like(x0))
    for i in range(1, c):
        xi = logits_ref[i].astype(jnp.float32)
        gt = xi > row_max                                  # strict: keeps first max
        amax = jnp.where(gt, jnp.int32(i), amax)
        row_max = jnp.where(gt, xi, row_max)
        true_logit = jnp.where(labels == i, xi, true_logit)

    # ---- second pass: softmax denominator ----
    sum_exp = jnp.zeros((ts, lanes), jnp.float32)
    for i in range(c):
        sum_exp = sum_exp + jnp.exp(logits_ref[i].astype(jnp.float32) - row_max)

    # per-pixel cross entropy (reduction='none') and L1 depth loss
    ce = row_max + jnp.log(sum_exp) - true_logit           # (TS, 128)
    l1 = jnp.abs(dpred_ref[...].astype(jnp.float32)
                 - dtrue_ref[...].astype(jnp.float32))     # (TS, 128)

    zero = jnp.zeros((ts, lanes), jnp.float32)
    one = jnp.ones((ts, lanes), jnp.float32)

    def fold_sum(q):
        # (TS, 128) -> (FOLD, 128): layout-preserving split of the sublane axis
        # into vreg groups + elementwise adds (pure VPU, no XLU).
        return jnp.sum(q.reshape(ts // fold, fold, lanes), axis=0)

    for i in range(c):
        sel = (amax == i) & valid                          # true select: NaN/Inf safe
        count_ref[i] = count_ref[i] + fold_sum(jnp.where(sel, one, zero))
        diff_ref[i] = diff_ref[i] + fold_sum(jnp.where(sel, ce, zero))
        depcls_ref[i] = depcls_ref[i] + fold_sum(jnp.where(sel, l1, zero))


@functools.partial(jax.jit, static_argnames=("tile_rows", "vmem_budget_bytes"))
def _multitask_stats(masks_pred, deps_pred, true_masks, true_deps, *,
                     tile_rows=None, vmem_budget_bytes=16 * 1024 * 1024):
    """Returns (pixel_count[C], diff_seg[C], dep_sum_per_class[C], dep_total)."""
    n, c, h, w = masks_pred.shape
    hw = h * w
    hw_pad = _round_up(hw, 128)
    s_pad = hw_pad // 128

    # free contiguous reshapes; keep native dtypes (bf16 logits/depths and
    # narrow integer labels stream fewer HBM bytes, kernel upcasts in-register)
    logits = masks_pred.reshape(n, c, hw)
    labels = true_masks.reshape(n, hw)
    dpred = deps_pred.reshape(n, hw)
    dtrue = true_deps.reshape(n, hw)
    if not jnp.issubdtype(labels.dtype, jnp.integer):
        labels = labels.astype(jnp.int32)

    if hw_pad != hw:
        # TODO(synk): this pad is one extra HBM copy; only taken when H*W is
        # not a multiple of 128 (padded pixels are masked out in-kernel).
        pad = hw_pad - hw
        logits = jnp.pad(logits, ((0, 0), (0, 0), (0, pad)))
        labels = jnp.pad(labels, ((0, 0), (0, pad)))
        dpred = jnp.pad(dpred, ((0, 0), (0, pad)))
        dtrue = jnp.pad(dtrue, ((0, 0), (0, pad)))

    logits = logits.reshape(n, c, s_pad, 128)
    labels = labels.reshape(n, s_pad, 128)
    dpred = dpred.reshape(n, s_pad, 128)
    dtrue = dtrue.reshape(n, s_pad, 128)

    # ---- pixel tile (in sublane rows) from a portable VMEM budget ----
    lsz = logits.dtype.itemsize
    isz = labels.dtype.itemsize
    dsz = max(dpred.dtype.itemsize, dtrue.dtype.itemsize)
    per_row = (2 * (c * lsz + isz + 2 * dsz) * 128        # double-buffered inputs
               + (c + 14) * 128 * 4)                       # f32 intermediates allowance
    ts = vmem_budget_bytes // per_row if tile_rows is None else tile_rows
    if ts >= s_pad:
        ts = s_pad                                         # full-dim block (any size ok)
    else:
        ts = max(32, (ts // 32) * 32)                      # safe for int8/bf16/f32 tiling
    fold = 8 if ts % 8 == 0 else ts

    tiles_total = pl.cdiv(s_pad, ts)
    # 2-way pixel split keeps both v7x TensorCores busy when N doesn't shard.
    num_splits = 2 if (tiles_total >= 2 and n % 2 == 1) else 1
    tiles_per_split = (tiles_total + num_splits - 1) // num_splits

    def in_map_cls(b, p, t):
        g = jnp.minimum(p * tiles_per_split + t, tiles_total - 1)  # clamp: safe DMA
        return (b, 0, g, 0)

    def in_map_pix(b, p, t):
        g = jnp.minimum(p * tiles_per_split + t, tiles_total - 1)
        return (b, g, 0)

    def out_map(b, p, t):
        return (b * num_splits + p, 0, 0, 0)

    grid = (n, num_splits, tiles_per_split)
    acc_shape = jax.ShapeDtypeStruct((n * num_splits, c, fold, 128), jnp.float32)

    count_p, diff_p, depcls_p = pl.pallas_call(
        functools.partial(_mtl_kernel, hw=hw),
        out_shape=(acc_shape, acc_shape, acc_shape),
        grid_spec=pltpu.PrefetchScalarGridSpec(
            num_scalar_prefetch=0,
            grid=grid,
            in_specs=[
                pl.BlockSpec((None, c, ts, 128), in_map_cls),
                pl.BlockSpec((None, ts, 128), in_map_pix),
                pl.BlockSpec((None, ts, 128), in_map_pix),
                pl.BlockSpec((None, ts, 128), in_map_pix),
            ],
            out_specs=[pl.BlockSpec((None, c, fold, 128), out_map)] * 3,
        ),
        compiler_params=pltpu.CompilerParams(
            dimension_semantics=("parallel", "parallel", "arbitrary"),
            vmem_limit_bytes=40 * 1024 * 1024),
    )(logits, labels, dpred, dtrue)

    # tiny final reductions (batch*splits, fold sublanes, 128 lanes) in XLA
    count = jnp.sum(count_p, axis=(0, 2, 3))
    diff = jnp.sum(diff_p, axis=(0, 2, 3))
    depcls = jnp.sum(depcls_p, axis=(0, 2, 3))
    deptot = jnp.sum(depcls)  # == sum(|dpred - dtrue|): exactly one class per pixel
    return count, diff, depcls, deptot


class MultiTaskLossPallas:
    """Stateful wrapper matching the PyTorch MultiTaskLoss forward semantics."""

    def __init__(self, n_classes):
        self.n_classes = n_classes
        self.loss_weight = jnp.ones((n_classes,), jnp.float32)
        self.alpha = jnp.float32(0.001)
        self.beta1 = jnp.float32(0.9)
        self.beta2 = jnp.float32(0.999)
        self.eps = jnp.float32(1e-08)
        self.moment_vector1 = jnp.zeros((n_classes,), jnp.float32)
        self.moment_vector2 = jnp.zeros((n_classes,), jnp.float32)
        self.timestep = jnp.float32(1.0)
        self.loss_seg_begin = None
        self.loss_dep_begin = None
        self.loss_seg_current = None
        self.loss_dep_current = None
        self.diff_seg = None
        self.pixel_num = None
        # TODO(synk): loss_weight_update / Adam-style weight post-processing is
        # O(n_classes) host-side bookkeeping outside the forward hot path; not
        # kernelized.

    def forward(self, loss_weight, masks_pred, deps_pred, true_masks, true_deps):
        n, c, h, w = masks_pred.shape
        total_px = float(n * h * w)

        count, diff, depcls, deptot = _multitask_stats(
            masks_pred, deps_pred, true_masks, true_deps)

        pixel_num = jnp.where(count == 0.0, 1.0, count)
        loss_seg_current = loss_weight * diff
        loss_dep_current = depcls

        loss_seg = jnp.mean(loss_seg_current / pixel_num)
        loss_dep = deptot / total_px

        self.pixel_num = pixel_num
        self.diff_seg = diff
        self.loss_seg_current = loss_seg_current
        self.loss_dep_current = loss_dep_current

        if self.loss_seg_begin is None:
            self.loss_seg_begin = loss_seg
            self.loss_dep_begin = loss_dep

        loss = loss_seg / self.loss_seg_begin + loss_dep / self.loss_dep_begin
        return loss


def _reference_stats(masks_pred, deps_pred, true_masks, true_deps):
    """Pure-JAX reference of the per-class statistics (for checking)."""
    n, c, h, w = masks_pred.shape
    logits = masks_pred.astype(jnp.float32)
    log_probs = jax.nn.log_softmax(logits, axis=1)
    ce = -jnp.take_along_axis(log_probs, true_masks[:, None].astype(jnp.int32),
                              axis=1)[:, 0]                                  # (N,H,W)
    l1 = jnp.abs(deps_pred.astype(jnp.float32)
                 - true_deps.astype(jnp.float32))[:, 0]                      # (N,H,W)
    pred = jnp.argmax(logits, axis=1)                                        # (N,H,W)
    onehot = jax.nn.one_hot(pred, c, axis=1, dtype=jnp.float32)              # (N,C,H,W)
    count = jnp.sum(onehot, axis=(0, 2, 3))
    diff = jnp.sum(onehot * ce[:, None], axis=(0, 2, 3))
    depcls = jnp.sum(onehot * l1[:, None], axis=(0, 2, 3))
    return count, diff, depcls


if __name__ == "__main__":
    # ---- test 1: module forward at small shapes ----
    n_classes = 4
    N, C, H, W = 2, n_classes, 16, 16

    key = jax.random.PRNGKey(0)
    k1, k2, k3, k4 = jax.random.split(key, 4)
    masks_pred = jax.random.normal(k1, (N, C, H, W), jnp.float32)
    true_masks = jax.random.randint(k2, (N, H, W), 0, n_classes, jnp.int32)
    deps_pred = jax.random.normal(k3, (N, 1, H, W), jnp.float32)
    true_deps = jax.random.normal(k4, (N, 1, H, W), jnp.float32)

    module = MultiTaskLossPallas(n_classes)
    loss = module.forward(module.loss_weight, masks_pred, deps_pred,
                          true_masks, true_deps)
    loss = jax.block_until_ready(loss)

    r_count, r_diff, r_depcls = _reference_stats(masks_pred, deps_pred,
                                                 true_masks, true_deps)
    r_pix = jnp.where(r_count == 0.0, 1.0, r_count)
    ref_seg = jnp.mean(module.loss_weight * r_diff / r_pix)
    ref_dep = jnp.sum(r_depcls) / (N * H * W)
    ker_seg = jnp.mean(module.loss_seg_current / module.pixel_num)
    ker_dep = jnp.sum(module.loss_dep_current) / (N * H * W)
    assert jnp.allclose(ker_seg, ref_seg, rtol=1e-4, atol=1e-5)
    assert jnp.allclose(ker_dep, ref_dep, rtol=1e-4, atol=1e-5)
    # pixel counts must cover every pixel exactly once
    assert jnp.allclose(jnp.sum(module.pixel_num), float(N * H * W))
    # first call: loss = loss_seg/loss_seg_begin + loss_dep/loss_dep_begin = 2
    assert jnp.allclose(loss, 2.0, rtol=1e-5, atol=1e-5)

    # ---- test 2: ragged H*W, multi-tile accumulation, 2-way pixel split ----
    N2, C2, H2, W2 = 1, 3, 60, 144      # H*W = 8640, not a multiple of 128
    k5, k6, k7, k8 = jax.random.split(jax.random.PRNGKey(1), 4)
    mp2 = jax.random.normal(k5, (N2, C2, H2, W2), jnp.float32)
    tm2 = jax.random.randint(k6, (N2, H2, W2), 0, C2, jnp.int32)
    dp2 = jax.random.normal(k7, (N2, 1, H2, W2), jnp.float32)
    td2 = jax.random.normal(k8, (N2, 1, H2, W2), jnp.float32)

    count2, diff2, depcls2, deptot2 = _multitask_stats(
        mp2, dp2, tm2, td2, tile_rows=32)    # small tile -> multiple tiles + split
    count2 = jax.block_until_ready(count2)

    rc2, rd2, rl2 = _reference_stats(mp2, dp2, tm2, td2)
    assert jnp.allclose(count2, rc2)
    assert jnp.allclose(diff2, rd2, rtol=1e-4, atol=1e-2)
    assert jnp.allclose(depcls2, rl2, rtol=1e-4, atol=1e-2)
    assert jnp.allclose(deptot2, jnp.sum(rl2), rtol=1e-4, atol=1e-2)
    assert jnp.allclose(jnp.sum(count2), float(N2 * H2 * W2))

    print("KERNEL_OK")
</pallas_src>

<mosaic_0001>
module attributes {stable_mosaic.version = 11 : i64} {
  func.func @_mtl_kernel(%arg0: i32, %arg1: i32, %arg2: i32, %arg3: memref<1x4x2x128xf32, #tpu.memory_space<vmem>>, %arg4: memref<1x2x128xi32, #tpu.memory_space<vmem>>, %arg5: memref<1x2x128xf32, #tpu.memory_space<vmem>>, %arg6: memref<1x2x128xf32, #tpu.memory_space<vmem>>, %arg7: memref<1x4x2x128xf32, #tpu.memory_space<vmem>>, %arg8: memref<1x4x2x128xf32, #tpu.memory_space<vmem>>, %arg9: memref<1x4x2x128xf32, #tpu.memory_space<vmem>>) attributes {dimension_semantics = [#tpu.dimension_semantics<parallel>, #tpu.dimension_semantics<parallel>, #tpu.dimension_semantics<arbitrary>], iteration_bounds = array<i64: 2, 1, 1>, scalar_prefetch = 0 : i64, scratch_operands = 0 : i64, tpu.core_type = #tpu.core_type<tc>, window_params = [{transform_indices = @transform_0, window_bounds = array<i64: 1, 4, 2, 128>}, {transform_indices = @transform_1, window_bounds = array<i64: 1, 2, 128>}, {transform_indices = @transform_2, window_bounds = array<i64: 1, 2, 128>}, {transform_indices = @transform_3, window_bounds = array<i64: 1, 2, 128>}, {transform_indices = @transform_4, window_bounds = array<i64: 1, 4, 2, 128>}, {transform_indices = @transform_5, window_bounds = array<i64: 1, 4, 2, 128>}, {transform_indices = @transform_6, window_bounds = array<i64: 1, 4, 2, 128>}]} {
    %c0_i32 = arith.constant 0 : i32
    %0 = arith.cmpi eq, %arg2, %c0_i32 : i32
    %1 = arith.extui %0 : i1 to i32
    %c0_i32_0 = arith.constant 0 : i32
    %2 = arith.cmpi ne, %1, %c0_i32_0 : i32
    scf.if %2 {
      %cst_160 = arith.constant 0.000000e+00 : f32
      %203 = vector.broadcast %cst_160 : f32 to vector<4x2x128xf32>
      %c0_161 = arith.constant 0 : index
      %c0_162 = arith.constant 0 : index
      %c0_163 = arith.constant 0 : index
      %c0_164 = arith.constant 0 : index
      %204 = vector.load %arg7[%c0_161, %c0_162, %c0_163, %c0_164] : memref<1x4x2x128xf32, #tpu.memory_space<vmem>>, vector<1x4x2x128xf32>
      %205 = vector.shape_cast %204 : vector<1x4x2x128xf32> to vector<4x2x128xf32>
      %206 = vector.shape_cast %203 : vector<4x2x128xf32> to vector<1x4x2x128xf32>
      tpu.vector_store %arg7[%c0_161, %c0_162, %c0_163, %c0_164], %206 {strides = array<i32>} : memref<1x4x2x128xf32, #tpu.memory_space<vmem>>, vector<1x4x2x128xf32>,
      %cst_165 = arith.constant 0.000000e+00 : f32
      %207 = vector.broadcast %cst_165 : f32 to vector<4x2x128xf32>
      %c0_166 = arith.constant 0 : index
      %c0_167 = arith.constant 0 : index
      %c0_168 = arith.constant 0 : index
      %c0_169 = arith.constant 0 : index
      %208 = vector.load %arg8[%c0_166, %c0_167, %c0_168, %c0_169] : memref<1x4x2x128xf32, #tpu.memory_space<vmem>>, vector<1x4x2x128xf32>
      %209 = vector.shape_cast %208 : vector<1x4x2x128xf32> to vector<4x2x128xf32>
      %210 = vector.shape_cast %207 : vector<4x2x128xf32> to vector<1x4x2x128xf32>
      tpu.vector_store %arg8[%c0_166, %c0_167, %c0_168, %c0_169], %210 {strides = array<i32>} : memref<1x4x2x128xf32, #tpu.memory_space<vmem>>, vector<1x4x2x128xf32>,
      %cst_170 = arith.constant 0.000000e+00 : f32
      %211 = vector.broadcast %cst_170 : f32 to vector<4x2x128xf32>
      %c0_171 = arith.constant 0 : index
      %c0_172 = arith.constant 0 : index
      %c0_173 = arith.constant 0 : index
      %c0_174 = arith.constant 0 : index
      %212 = vector.load %arg9[%c0_171, %c0_172, %c0_173, %c0_174] : memref<1x4x2x128xf32, #tpu.memory_space<vmem>>, vector<1x4x2x128xf32>
      %213 = vector.shape_cast %212 : vector<1x4x2x128xf32> to vector<4x2x128xf32>
      %214 = vector.shape_cast %211 : vector<4x2x128xf32> to vector<1x4x2x128xf32>
      tpu.vector_store %arg9[%c0_171, %c0_172, %c0_173, %c0_174], %214 {strides = array<i32>} : memref<1x4x2x128xf32, #tpu.memory_space<vmem>>, vector<1x4x2x128xf32>,
    } else {
    }
    %c0 = arith.constant 0 : index
    %c0_1 = arith.constant 0 : index
    %c0_2 = arith.constant 0 : index
    %3 = vector.load %arg4[%c0, %c0_1, %c0_2] : memref<1x2x128xi32, #tpu.memory_space<vmem>>, vector<1x2x128xi32>
    %4 = vector.shape_cast %3 : vector<1x2x128xi32> to vector<2x128xi32>
    %c1_i32 = arith.constant 1 : i32
    %5 = arith.muli %arg1, %c1_i32 : i32
    %6 = arith.addi %5, %arg2 : i32
    %c2_i32 = arith.constant 2 : i32
    %7 = arith.muli %6, %c2_i32 : i32
    %8 = tpu.iota {dimensions = array<i32: 0>} : vector<2x128xi32>
    %9 = vector.broadcast %7 : i32 to vector<2x128xi32>
    %10 = arith.addi %9, %8 : vector<2x128xi32>
    %11 = tpu.iota {dimensions = array<i32: 1>} : vector<2x128xi32>
    %c128_i32 = arith.constant 128 : i32
    %12 = vector.broadcast %c128_i32 : i32 to vector<2x128xi32>
    %13 = arith.muli %10, %12 : vector<2x128xi32>
    %14 = arith.addi %13, %11 : vector<2x128xi32>
    %c256_i32 = arith.constant 256 : i32
    %15 = vector.broadcast %c256_i32 : i32 to vector<2x128xi32>
    %16 = arith.cmpi slt, %14, %15 : vector<2x128xi32>
    %c0_3 = arith.constant 0 : index
    %c0_4 = arith.constant 0 : index
    %c0_5 = arith.constant 0 : index
    %c0_6 = arith.constant 0 : index
    %17 = vector.load %arg3[%c0_3, %c0_4, %c0_5, %c0_6] : memref<1x4x2x128xf32, #tpu.memory_space<vmem>>, vector<1x1x2x128xf32>
    %18 = vector.shape_cast %17 : vector<1x1x2x128xf32> to vector<2x128xf32>
    %c0_i32_7 = arith.constant 0 : i32
    %19 = vector.broadcast %c0_i32_7 : i32 to vector<2x128xi32>
    %c0_i32_8 = arith.constant 0 : i32
    %20 = vector.broadcast %c0_i32_8 : i32 to vector<2x128xi32>
    %21 = arith.cmpi eq, %4, %20 : vector<2x128xi32>
    %cst = arith.constant 0.000000e+00 : f32
    %22 = vector.broadcast %cst : f32 to vector<2x128xf32>
    %23 = arith.select %21, %18, %22 : vector<2x128xi1>, vector<2x128xf32>
    %c0_9 = arith.constant 0 : index
    %c1 = arith.constant 1 : index
    %c0_10 = arith.constant 0 : index
    %c0_11 = arith.constant 0 : index
    %24 = vector.load %arg3[%c0_9, %c1, %c0_10, %c0_11] : memref<1x4x2x128xf32, #tpu.memory_space<vmem>>, vector<1x1x2x128xf32>
    %25 = vector.shape_cast %24 : vector<1x1x2x128xf32> to vector<2x128xf32>
    %26 = arith.cmpf ogt, %25, %18 : vector<2x128xf32>
    %c1_i32_12 = arith.constant 1 : i32
    %27 = vector.broadcast %c1_i32_12 : i32 to vector<2x128xi32>
    %28 = arith.select %26, %27, %19 : vector<2x128xi1>, vector<2x128xi32>
    %29 = arith.select %26, %25, %18 : vector<2x128xi1>, vector<2x128xf32>
    %c1_i32_13 = arith.constant 1 : i32
    %30 = vector.broadcast %c1_i32_13 : i32 to vector<2x128xi32>
    %31 = arith.cmpi eq, %4, %30 : vector<2x128xi32>
    %32 = arith.select %31, %25, %23 : vector<2x128xi1>, vector<2x128xf32>
    %c0_14 = arith.constant 0 : index
    %c2 = arith.constant 2 : index
    %c0_15 = arith.constant 0 : index
    %c0_16 = arith.constant 0 : index
    %33 = vector.load %arg3[%c0_14, %c2, %c0_15, %c0_16] : memref<1x4x2x128xf32, #tpu.memory_space<vmem>>, vector<1x1x2x128xf32>
    %34 = vector.shape_cast %33 : vector<1x1x2x128xf32> to vector<2x128xf32>
    %35 = arith.cmpf ogt, %34, %29 : vector<2x128xf32>
    %c2_i32_17 = arith.constant 2 : i32
    %36 = vector.broadcast %c2_i32_17 : i32 to vector<2x128xi32>
    %37 = arith.select %35, %36, %28 : vector<2x128xi1>, vector<2x128xi32>
    %38 = arith.select %35, %34, %29 : vector<2x128xi1>, vector<2x128xf32>
    %c2_i32_18 = arith.constant 2 : i32
    %39 = vector.broadcast %c2_i32_18 : i32 to vector<2x128xi32>
    %40 = arith.cmpi eq, %4, %39 : vector<2x128xi32>
    %41 = arith.select %40, %34, %32 : vector<2x128xi1>, vector<2x128xf32>
    %c0_19 = arith.constant 0 : index
    %c3 = arith.constant 3 : index
    %c0_20 = arith.constant 0 : index
    %c0_21 = arith.constant 0 : index
    %42 = vector.load %arg3[%c0_19, %c3, %c0_20, %c0_21] : memref<1x4x2x128xf32, #tpu.memory_space<vmem>>, vector<1x1x2x128xf32>
    %43 = vector.shape_cast %42 : vector<1x1x2x128xf32> to vector<2x128xf32>
    %44 = arith.cmpf ogt, %43, %38 : vector<2x128xf32>
    %c3_i32 = arith.constant 3 : i32
    %45 = vector.broadcast %c3_i32 : i32 to vector<2x128xi32>
    %46 = arith.select %44, %45, %37 : vector<2x128xi1>, vector<2x128xi32>
    %47 = arith.select %44, %43, %38 : vector<2x128xi1>, vector<2x128xf32>
    %c3_i32_22 = arith.constant 3 : i32
    %48 = vector.broadcast %c3_i32_22 : i32 to vector<2x128xi32>
    %49 = arith.cmpi eq, %4, %48 : vector<2x128xi32>
    %50 = arith.select %49, %43, %41 : vector<2x128xi1>, vector<2x128xf32>
    %cst_23 = arith.constant 0.000000e+00 : f32
    %51 = vector.broadcast %cst_23 : f32 to vector<2x128xf32>
    %c0_24 = arith.constant 0 : index
    %c0_25 = arith.constant 0 : index
    %c0_26 = arith.constant 0 : index
    %c0_27 = arith.constant 0 : index
    %52 = vector.load %arg3[%c0_24, %c0_25, %c0_26, %c0_27] : memref<1x4x2x128xf32, #tpu.memory_space<vmem>>, vector<1x1x2x128xf32>
    %53 = vector.shape_cast %52 : vector<1x1x2x128xf32> to vector<2x128xf32>
    %54 = arith.subf %53, %47 : vector<2x128xf32>
    %55 = math.exp %54 : vector<2x128xf32>
    %56 = arith.addf %51, %55 : vector<2x128xf32>
    %c0_28 = arith.constant 0 : index
    %c1_29 = arith.constant 1 : index
    %c0_30 = arith.constant 0 : index
    %c0_31 = arith.constant 0 : index
    %57 = vector.load %arg3[%c0_28, %c1_29, %c0_30, %c0_31] : memref<1x4x2x128xf32, #tpu.memory_space<vmem>>, vector<1x1x2x128xf32>
    %58 = vector.shape_cast %57 : vector<1x1x2x128xf32> to vector<2x128xf32>
    %59 = arith.subf %58, %47 : vector<2x128xf32>
    %60 = math.exp %59 : vector<2x128xf32>
    %61 = arith.addf %56, %60 : vector<2x128xf32>
    %c0_32 = arith.constant 0 : index
    %c2_33 = arith.constant 2 : index
    %c0_34 = arith.constant 0 : index
    %c0_35 = arith.constant 0 : index
    %62 = vector.load %arg3[%c0_32, %c2_33, %c0_34, %c0_35] : memref<1x4x2x128xf32, #tpu.memory_space<vmem>>, vector<1x1x2x128xf32>
    %63 = vector.shape_cast %62 : vector<1x1x2x128xf32> to vector<2x128xf32>
    %64 = arith.subf %63, %47 : vector<2x128xf32>
    %65 = math.exp %64 : vector<2x128xf32>
    %66 = arith.addf %61, %65 : vector<2x128xf32>
    %c0_36 = arith.constant 0 : index
    %c3_37 = arith.constant 3 : index
    %c0_38 = arith.constant 0 : index
    %c0_39 = arith.constant 0 : index
    %67 = vector.load %arg3[%c0_36, %c3_37, %c0_38, %c0_39] : memref<1x4x2x128xf32, #tpu.memory_space<vmem>>, vector<1x1x2x128xf32>
    %68 = vector.shape_cast %67 : vector<1x1x2x128xf32> to vector<2x128xf32>
    %69 = arith.subf %68, %47 : vector<2x128xf32>
    %70 = math.exp %69 : vector<2x128xf32>
    %71 = arith.addf %66, %70 : vector<2x128xf32>
    %72 = math.log %71 : vector<2x128xf32>
    %73 = arith.addf %47, %72 : vector<2x128xf32>
    %74 = arith.subf %73, %50 : vector<2x128xf32>
    %c0_40 = arith.constant 0 : index
    %c0_41 = arith.constant 0 : index
    %c0_42 = arith.constant 0 : index
    %75 = vector.load %arg5[%c0_40, %c0_41, %c0_42] : memref<1x2x128xf32, #tpu.memory_space<vmem>>, vector<1x2x128xf32>
    %76 = vector.shape_cast %75 : vector<1x2x128xf32> to vector<2x128xf32>
    %c0_43 = arith.constant 0 : index
    %c0_44 = arith.constant 0 : index
    %c0_45 = arith.constant 0 : index
    %77 = vector.load %arg6[%c0_43, %c0_44, %c0_45] : memref<1x2x128xf32, #tpu.memory_space<vmem>>, vector<1x2x128xf32>
    %78 = vector.shape_cast %77 : vector<1x2x128xf32> to vector<2x128xf32>
    %79 = arith.subf %76, %78 : vector<2x128xf32>
    %80 = math.absf %79 : vector<2x128xf32>
    %cst_46 = arith.constant 0.000000e+00 : f32
    %81 = vector.broadcast %cst_46 : f32 to vector<2x128xf32>
    %cst_47 = arith.constant 1.000000e+00 : f32
    %82 = vector.broadcast %cst_47 : f32 to vector<2x128xf32>
    %c0_i32_48 = arith.constant 0 : i32
    %83 = vector.broadcast %c0_i32_48 : i32 to vector<2x128xi32>
    %84 = arith.cmpi eq, %46, %83 : vector<2x128xi32>
    %85 = arith.andi %84, %16 : vector<2x128xi1>
    %c0_49 = arith.constant 0 : index
    %c0_50 = arith.constant 0 : index
    %c0_51 = arith.constant 0 : index
    %c0_52 = arith.constant 0 : index
    %86 = vector.load %arg7[%c0_49, %c0_50, %c0_51, %c0_52] : memref<1x4x2x128xf32, #tpu.memory_space<vmem>>, vector<1x1x2x128xf32>
    %87 = vector.shape_cast %86 : vector<1x1x2x128xf32> to vector<2x128xf32>
    %88 = arith.select %85, %82, %81 : vector<2x128xi1>, vector<2x128xf32>
    %89 = vector.shape_cast %88 : vector<2x128xf32> to vector<1x2x128xf32>
    %cst_53 = arith.constant dense<0.000000e+00> : vector<2x128xf32>
    %90 = vector.multi_reduction <add>, %89, %cst_53 [0] : vector<1x2x128xf32> to vector<2x128xf32>
    %91 = arith.addf %87, %90 : vector<2x128xf32>
    %c0_54 = arith.constant 0 : index
    %c0_55 = arith.constant 0 : index
    %c0_56 = arith.constant 0 : index
    %c0_57 = arith.constant 0 : index
    %92 = vector.load %arg7[%c0_54, %c0_55, %c0_56, %c0_57] : memref<1x4x2x128xf32, #tpu.memory_space<vmem>>, vector<1x1x2x128xf32>
    %93 = vector.shape_cast %92 : vector<1x1x2x128xf32> to vector<2x128xf32>
    %94 = vector.shape_cast %91 : vector<2x128xf32> to vector<1x1x2x128xf32>
    tpu.vector_store %arg7[%c0_54, %c0_55, %c0_56, %c0_57], %94 {strides = array<i32>} : memref<1x4x2x128xf32, #tpu.memory_space<vmem>>, vector<1x1x2x128xf32>,
    %c0_58 = arith.constant 0 : index
    %c0_59 = arith.constant 0 : index
    %c0_60 = arith.constant 0 : index
    %c0_61 = arith.constant 0 : index
    %95 = vector.load %arg8[%c0_58, %c0_59, %c0_60, %c0_61] : memref<1x4x2x128xf32, #tpu.memory_space<vmem>>, vector<1x1x2x128xf32>
    %96 = vector.shape_cast %95 : vector<1x1x2x128xf32> to vector<2x128xf32>
    %97 = arith.select %85, %74, %81 : vector<2x128xi1>, vector<2x128xf32>
    %98 = vector.shape_cast %97 : vector<2x128xf32> to vector<1x2x128xf32>
    %cst_62 = arith.constant dense<0.000000e+00> : vector<2x128xf32>
    %99 = vector.multi_reduction <add>, %98, %cst_62 [0] : vector<1x2x128xf32> to vector<2x128xf32>
    %100 = arith.addf %96, %99 : vector<2x128xf32>
    %c0_63 = arith.constant 0 : index
    %c0_64 = arith.constant 0 : index
    %c0_65 = arith.constant 0 : index
    %c0_66 = arith.constant 0 : index
    %101 = vector.load %arg8[%c0_63, %c0_64, %c0_65, %c0_66] : memref<1x4x2x128xf32, #tpu.memory_space<vmem>>, vector<1x1x2x128xf32>
    %102 = vector.shape_cast %101 : vector<1x1x2x128xf32> to vector<2x128xf32>
    %103 = vector.shape_cast %100 : vector<2x128xf32> to vector<1x1x2x128xf32>
    tpu.vector_store %arg8[%c0_63, %c0_64, %c0_65, %c0_66], %103 {strides = array<i32>} : memref<1x4x2x128xf32, #tpu.memory_space<vmem>>, vector<1x1x2x128xf32>,
    %c0_67 = arith.constant 0 : index
    %c0_68 = arith.constant 0 : index
    %c0_69 = arith.constant 0 : index
    %c0_70 = arith.constant 0 : index
    %104 = vector.load %arg9[%c0_67, %c0_68, %c0_69, %c0_70] : memref<1x4x2x128xf32, #tpu.memory_space<vmem>>, vector<1x1x2x128xf32>
    %105 = vector.shape_cast %104 : vector<1x1x2x128xf32> to vector<2x128xf32>
    %106 = arith.select %85, %80, %81 : vector<2x128xi1>, vector<2x128xf32>
    %107 = vector.shape_cast %106 : vector<2x128xf32> to vector<1x2x128xf32>
    %cst_71 = arith.constant dense<0.000000e+00> : vector<2x128xf32>
    %108 = vector.multi_reduction <add>, %107, %cst_71 [0] : vector<1x2x128xf32> to vector<2x128xf32>
    %109 = arith.addf %105, %108 : vector<2x128xf32>
    %c0_72 = arith.constant 0 : index
    %c0_73 = arith.constant 0 : index
    %c0_74 = arith.constant 0 : index
    %c0_75 = arith.constant 0 : index
    %110 = vector.load %arg9[%c0_72, %c0_73, %c0_74, %c0_75] : memref<1x4x2x128xf32, #tpu.memory_space<vmem>>, vector<1x1x2x128xf32>
    %111 = vector.shape_cast %110 : vector<1x1x2x128xf32> to vector<2x128xf32>
    %112 = vector.shape_cast %109 : vector<2x128xf32> to vector<1x1x2x128xf32>
    tpu.vector_store %arg9[%c0_72, %c0_73, %c0_74, %c0_75], %112 {strides = array<i32>} : memref<1x4x2x128xf32, #tpu.memory_space<vmem>>, vector<1x1x2x128xf32>,
    %c1_i32_76 = arith.constant 1 : i32
    %113 = vector.broadcast %c1_i32_76 : i32 to vector<2x128xi32>
    %114 = arith.cmpi eq, %46, %113 : vector<2x128xi32>
    %115 = arith.andi %114, %16 : vector<2x128xi1>
    %c0_77 = arith.constant 0 : index
    %c1_78 = arith.constant 1 : index
    %c0_79 = arith.constant 0 : index
    %c0_80 = arith.constant 0 : index
    %116 = vector.load %arg7[%c0_77, %c1_78, %c0_79, %c0_80] : memref<1x4x2x128xf32, #tpu.memory_space<vmem>>, vector<1x1x2x128xf32>
    %117 = vector.shape_cast %116 : vector<1x1x2x128xf32> to vector<2x128xf32>
    %118 = arith.select %115, %82, %81 : vector<2x128xi1>, vector<2x128xf32>
    %119 = vector.shape_cast %118 : vector<2x128xf32> to vector<1x2x128xf32>
    %cst_81 = arith.constant dense<0.000000e+00> : vector<2x128xf32>
    %120 = vector.multi_reduction <add>, %119, %cst_81 [0] : vector<1x2x128xf32> to vector<2x128xf32>
    %121 = arith.addf %117, %120 : vector<2x128xf32>
    %c0_82 = arith.constant 0 : index
    %c1_83 = arith.constant 1 : index
    %c0_84 = arith.constant 0 : index
    %c0_85 = arith.constant 0 : index
    %122 = vector.load %arg7[%c0_82, %c1_83, %c0_84, %c0_85] : memref<1x4x2x128xf32, #tpu.memory_space<vmem>>, vector<1x1x2x128xf32>
    %123 = vector.shape_cast %122 : vector<1x1x2x128xf32> to vector<2x128xf32>
    %124 = vector.shape_cast %121 : vector<2x128xf32> to vector<1x1x2x128xf32>
    tpu.vector_store %arg7[%c0_82, %c1_83, %c0_84, %c0_85], %124 {strides = array<i32>} : memref<1x4x2x128xf32, #tpu.memory_space<vmem>>, vector<1x1x2x128xf32>,
    %c0_86 = arith.constant 0 : index
    %c1_87 = arith.constant 1 : index
    %c0_88 = arith.constant 0 : index
    %c0_89 = arith.constant 0 : index
    %125 = vector.load %arg8[%c0_86, %c1_87, %c0_88, %c0_89] : memref<1x4x2x128xf32, #tpu.memory_space<vmem>>, vector<1x1x2x128xf32>
    %126 = vector.shape_cast %125 : vector<1x1x2x128xf32> to vector<2x128xf32>
    %127 = arith.select %115, %74, %81 : vector<2x128xi1>, vector<2x128xf32>
    %128 = vector.shape_cast %127 : vector<2x128xf32> to vector<1x2x128xf32>
    %cst_90 = arith.constant dense<0.000000e+00> : vector<2x128xf32>
    %129 = vector.multi_reduction <add>, %128, %cst_90 [0] : vector<1x2x128xf32> to vector<2x128xf32>
    %130 = arith.addf %126, %129 : vector<2x128xf32>
    %c0_91 = arith.constant 0 : index
    %c1_92 = arith.constant 1 : index
    %c0_93 = arith.constant 0 : index
    %c0_94 = arith.constant 0 : index
    %131 = vector.load %arg8[%c0_91, %c1_92, %c0_93, %c0_94] : memref<1x4x2x128xf32, #tpu.memory_space<vmem>>, vector<1x1x2x128xf32>
    %132 = vector.shape_cast %131 : vector<1x1x2x128xf32> to vector<2x128xf32>
    %133 = vector.shape_cast %130 : vector<2x128xf32> to vector<1x1x2x128xf32>
    tpu.vector_store %arg8[%c0_91, %c1_92, %c0_93, %c0_94], %133 {strides = array<i32>} : memref<1x4x2x128xf32, #tpu.memory_space<vmem>>, vector<1x1x2x128xf32>,
    %c0_95 = arith.constant 0 : index
    %c1_96 = arith.constant 1 : index
    %c0_97 = arith.constant 0 : index
    %c0_98 = arith.constant 0 : index
    %134 = vector.load %arg9[%c0_95, %c1_96, %c0_97, %c0_98] : memref<1x4x2x128xf32, #tpu.memory_space<vmem>>, vector<1x1x2x128xf32>
    %135 = vector.shape_cast %134 : vector<1x1x2x128xf32> to vector<2x128xf32>
    %136 = arith.select %115, %80, %81 : vector<2x128xi1>, vector<2x128xf32>
    %137 = vector.shape_cast %136 : vector<2x128xf32> to vector<1x2x128xf32>
    %cst_99 = arith.constant dense<0.000000e+00> : vector<2x128xf32>
    %138 = vector.multi_reduction <add>, %137, %cst_99 [0] : vector<1x2x128xf32> to vector<2x128xf32>
    %139 = arith.addf %135, %138 : vector<2x128xf32>
    %c0_100 = arith.constant 0 : index
    %c1_101 = arith.constant 1 : index
    %c0_102 = arith.constant 0 : index
    %c0_103 = arith.constant 0 : index
    %140 = vector.load %arg9[%c0_100, %c1_101, %c0_102, %c0_103] : memref<1x4x2x128xf32, #tpu.memory_space<vmem>>, vector<1x1x2x128xf32>
    %141 = vector.shape_cast %140 : vector<1x1x2x128xf32> to vector<2x128xf32>
    %142 = vector.shape_cast %139 : vector<2x128xf32> to vector<1x1x2x128xf32>
    tpu.vector_store %arg9[%c0_100, %c1_101, %c0_102, %c0_103], %142 {strides = array<i32>} : memref<1x4x2x128xf32, #tpu.memory_space<vmem>>, vector<1x1x2x128xf32>,
    %c2_i32_104 = arith.constant 2 : i32
    %143 = vector.broadcast %c2_i32_104 : i32 to vector<2x128xi32>
    %144 = arith.cmpi eq, %46, %143 : vector<2x128xi32>
    %145 = arith.andi %144, %16 : vector<2x128xi1>
    %c0_105 = arith.constant 0 : index
    %c2_106 = arith.constant 2 : index
    %c0_107 = arith.constant 0 : index
    %c0_108 = arith.constant 0 : index
    %146 = vector.load %arg7[%c0_105, %c2_106, %c0_107, %c0_108] : memref<1x4x2x128xf32, #tpu.memory_space<vmem>>, vector<1x1x2x128xf32>
    %147 = vector.shape_cast %146 : vector<1x1x2x128xf32> to vector<2x128xf32>
    %148 = arith.select %145, %82, %81 : vector<2x128xi1>, vector<2x128xf32>
    %149 = vector.shape_cast %148 : vector<2x128xf32> to vector<1x2x128xf32>
    %cst_109 = arith.constant dense<0.000000e+00> : vector<2x128xf32>
    %150 = vector.multi_reduction <add>, %149, %cst_109 [0] : vector<1x2x128xf32> to vector<2x128xf32>
    %151 = arith.addf %147, %150 : vector<2x128xf32>
    %c0_110 = arith.constant 0 : index
    %c2_111 = arith.constant 2 : index
    %c0_112 = arith.constant 0 : index
    %c0_113 = arith.constant 0 : index
    %152 = vector.load %arg7[%c0_110, %c2_111, %c0_112, %c0_113] : memref<1x4x2x128xf32, #tpu.memory_space<vmem>>, vector<1x1x2x128xf32>
    %153 = vector.shape_cast %152 : vector<1x1x2x128xf32> to vector<2x128xf32>
    %154 = vector.shape_cast %151 : vector<2x128xf32> to vector<1x1x2x128xf32>
    tpu.vector_store %arg7[%c0_110, %c2_111, %c0_112, %c0_113], %154 {strides = array<i32>} : memref<1x4x2x128xf32, #tpu.memory_space<vmem>>, vector<1x1x2x128xf32>,
    %c0_114 = arith.constant 0 : index
    %c2_115 = arith.constant 2 : index
    %c0_116 = arith.constant 0 : index
    %c0_117 = arith.constant 0 : index
    %155 = vector.load %arg8[%c0_114, %c2_115, %c0_116, %c0_117] : memref<1x4x2x128xf32, #tpu.memory_space<vmem>>, vector<1x1x2x128xf32>
    %156 = vector.shape_cast %155 : vector<1x1x2x128xf32> to vector<2x128xf32>
    %157 = arith.select %145, %74, %81 : vector<2x128xi1>, vector<2x128xf32>
    %158 = vector.shape_cast %157 : vector<2x128xf32> to vector<1x2x128xf32>
    %cst_118 = arith.constant dense<0.000000e+00> : vector<2x128xf32>
    %159 = vector.multi_reduction <add>, %158, %cst_118 [0] : vector<1x2x128xf32> to vector<2x128xf32>
    %160 = arith.addf %156, %159 : vector<2x128xf32>
    %c0_119 = arith.constant 0 : index
    %c2_120 = arith.constant 2 : index
    %c0_121 = arith.constant 0 : index
    %c0_122 = arith.constant 0 : index
    %161 = vector.load %arg8[%c0_119, %c2_120, %c0_121, %c0_122] : memref<1x4x2x128xf32, #tpu.memory_space<vmem>>, vector<1x1x2x128xf32>
    %162 = vector.shape_cast %161 : vector<1x1x2x128xf32> to vector<2x128xf32>
    %163 = vector.shape_cast %160 : vector<2x128xf32> to vector<1x1x2x128xf32>
    tpu.vector_store %arg8[%c0_119, %c2_120, %c0_121, %c0_122], %163 {strides = array<i32>} : memref<1x4x2x128xf32, #tpu.memory_space<vmem>>, vector<1x1x2x128xf32>,
    %c0_123 = arith.constant 0 : index
    %c2_124 = arith.constant 2 : index
    %c0_125 = arith.constant 0 : index
    %c0_126 = arith.constant 0 : index
    %164 = vector.load %arg9[%c0_123, %c2_124, %c0_125, %c0_126] : memref<1x4x2x128xf32, #tpu.memory_space<vmem>>, vector<1x1x2x128xf32>
    %165 = vector.shape_cast %164 : vector<1x1x2x128xf32> to vector<2x128xf32>
    %166 = arith.select %145, %80, %81 : vector<2x128xi1>, vector<2x128xf32>
    %167 = vector.shape_cast %166 : vector<2x128xf32> to vector<1x2x128xf32>
    %cst_127 = arith.constant dense<0.000000e+00> : vector<2x128xf32>
    %168 = vector.multi_reduction <add>, %167, %cst_127 [0] : vector<1x2x128xf32> to vector<2x128xf32>
    %169 = arith.addf %165, %168 : vector<2x128xf32>
    %c0_128 = arith.constant 0 : index
    %c2_129 = arith.constant 2 : index
    %c0_130 = arith.constant 0 : index
    %c0_131 = arith.constant 0 : index
    %170 = vector.load %arg9[%c0_128, %c2_129, %c0_130, %c0_131] : memref<1x4x2x128xf32, #tpu.memory_space<vmem>>, vector<1x1x2x128xf32>
    %171 = vector.shape_cast %170 : vector<1x1x2x128xf32> to vector<2x128xf32>
    %172 = vector.shape_cast %169 : vector<2x128xf32> to vector<1x1x2x128xf32>
    tpu.vector_store %arg9[%c0_128, %c2_129, %c0_130, %c0_131], %172 {strides = array<i32>} : memref<1x4x2x128xf32, #tpu.memory_space<vmem>>, vector<1x1x2x128xf32>,
    %c3_i32_132 = arith.constant 3 : i32
    %173 = vector.broadcast %c3_i32_132 : i32 to vector<2x128xi32>
    %174 = arith.cmpi eq, %46, %173 : vector<2x128xi32>
    %175 = arith.andi %174, %16 : vector<2x128xi1>
    %c0_133 = arith.constant 0 : index
    %c3_134 = arith.constant 3 : index
    %c0_135 = arith.constant 0 : index
    %c0_136 = arith.constant 0 : index
    %176 = vector.load %arg7[%c0_133, %c3_134, %c0_135, %c0_136] : memref<1x4x2x128xf32, #tpu.memory_space<vmem>>, vector<1x1x2x128xf32>
    %177 = vector.shape_cast %176 : vector<1x1x2x128xf32> to vector<2x128xf32>
    %178 = arith.select %175, %82, %81 : vector<2x128xi1>, vector<2x128xf32>
    %179 = vector.shape_cast %178 : vector<2x128xf32> to vector<1x2x128xf32>
    %cst_137 = arith.constant dense<0.000000e+00> : vector<2x128xf32>
    %180 = vector.multi_reduction <add>, %179, %cst_137 [0] : vector<1x2x128xf32> to vector<2x128xf32>
    %181 = arith.addf %177, %180 : vector<2x128xf32>
    %c0_138 = arith.constant 0 : index
    %c3_139 = arith.constant 3 : index
    %c0_140 = arith.constant 0 : index
    %c0_141 = arith.constant 0 : index
    %182 = vector.load %arg7[%c0_138, %c3_139, %c0_140, %c0_141] : memref<1x4x2x128xf32, #tpu.memory_space<vmem>>, vector<1x1x2x128xf32>
    %183 = vector.shape_cast %182 : vector<1x1x2x128xf32> to vector<2x128xf32>
    %184 = vector.shape_cast %181 : vector<2x128xf32> to vector<1x1x2x128xf32>
    tpu.vector_store %arg7[%c0_138, %c3_139, %c0_140, %c0_141], %184 {strides = array<i32>} : memref<1x4x2x128xf32, #tpu.memory_space<vmem>>, vector<1x1x2x128xf32>,
    %c0_142 = arith.constant 0 : index
    %c3_143 = arith.constant 3 : index
    %c0_144 = arith.constant 0 : index
    %c0_145 = arith.constant 0 : index
    %185 = vector.load %arg8[%c0_142, %c3_143, %c0_144, %c0_145] : memref<1x4x2x128xf32, #tpu.memory_space<vmem>>, vector<1x1x2x128xf32>
    %186 = vector.shape_cast %185 : vector<1x1x2x128xf32> to vector<2x128xf32>
    %187 = arith.select %175, %74, %81 : vector<2x128xi1>, vector<2x128xf32>
    %188 = vector.shape_cast %187 : vector<2x128xf32> to vector<1x2x128xf32>
    %cst_146 = arith.constant dense<0.000000e+00> : vector<2x128xf32>
    %189 = vector.multi_reduction <add>, %188, %cst_146 [0] : vector<1x2x128xf32> to vector<2x128xf32>
    %190 = arith.addf %186, %189 : vector<2x128xf32>
    %c0_147 = arith.constant 0 : index
    %c3_148 = arith.constant 3 : index
    %c0_149 = arith.constant 0 : index
    %c0_150 = arith.constant 0 : index
    %191 = vector.load %arg8[%c0_147, %c3_148, %c0_149, %c0_150] : memref<1x4x2x128xf32, #tpu.memory_space<vmem>>, vector<1x1x2x128xf32>
    %192 = vector.shape_cast %191 : vector<1x1x2x128xf32> to vector<2x128xf32>
    %193 = vector.shape_cast %190 : vector<2x128xf32> to vector<1x1x2x128xf32>
    tpu.vector_store %arg8[%c0_147, %c3_148, %c0_149, %c0_150], %193 {strides = array<i32>} : memref<1x4x2x128xf32, #tpu.memory_space<vmem>>, vector<1x1x2x128xf32>,
    %c0_151 = arith.constant 0 : index
    %c3_152 = arith.constant 3 : index
    %c0_153 = arith.constant 0 : index
    %c0_154 = arith.constant 0 : index
    %194 = vector.load %arg9[%c0_151, %c3_152, %c0_153, %c0_154] : memref<1x4x2x128xf32, #tpu.memory_space<vmem>>, vector<1x1x2x128xf32>
    %195 = vector.shape_cast %194 : vector<1x1x2x128xf32> to vector<2x128xf32>
    %196 = arith.select %175, %80, %81 : vector<2x128xi1>, vector<2x128xf32>
    %197 = vector.shape_cast %196 : vector<2x128xf32> to vector<1x2x128xf32>
    %cst_155 = arith.constant dense<0.000000e+00> : vector<2x128xf32>
    %198 = vector.multi_reduction <add>, %197, %cst_155 [0] : vector<1x2x128xf32> to vector<2x128xf32>
    %199 = arith.addf %195, %198 : vector<2x128xf32>
    %c0_156 = arith.constant 0 : index
    %c3_157 = arith.constant 3 : index
    %c0_158 = arith.constant 0 : index
    %c0_159 = arith.constant 0 : index
    %200 = vector.load %arg9[%c0_156, %c3_157, %c0_158, %c0_159] : memref<1x4x2x128xf32, #tpu.memory_space<vmem>>, vector<1x1x2x128xf32>
    %201 = vector.shape_cast %200 : vector<1x1x2x128xf32> to vector<2x128xf32>
    %202 = vector.shape_cast %199 : vector<2x128xf32> to vector<1x1x2x128xf32>
    tpu.vector_store %arg9[%c0_156, %c3_157, %c0_158, %c0_159], %202 {strides = array<i32>} : memref<1x4x2x128xf32, #tpu.memory_space<vmem>>, vector<1x1x2x128xf32>,
    return
  }
  func.func @transform_0(%arg0: i32, %arg1: i32, %arg2: i32) -> (i32, i32, i32, i32) {
    %c1_i32 = arith.constant 1 : i32
    %0 = arith.muli %arg1, %c1_i32 : i32
    %1 = arith.addi %0, %arg2 : i32
    %c0_i32 = arith.constant 0 : i32
    %2 = arith.minsi %1, %c0_i32 : i32
    %c0_i32_0 = arith.constant 0 : i32
    %c0_i32_1 = arith.constant 0 : i32
    %c0_i32_2 = arith.constant 0 : i32
    return %arg0, %c0_i32_0, %2, %c0_i32_1 : i32, i32, i32, i32
  }
  func.func @transform_1(%arg0: i32, %arg1: i32, %arg2: i32) -> (i32, i32, i32) {
    %c1_i32 = arith.constant 1 : i32
    %0 = arith.muli %arg1, %c1_i32 : i32
    %1 = arith.addi %0, %arg2 : i32
    %c0_i32 = arith.constant 0 : i32
    %2 = arith.minsi %1, %c0_i32 : i32
    %c0_i32_0 = arith.constant 0 : i32
    %c0_i32_1 = arith.constant 0 : i32
    return %arg0, %2, %c0_i32_0 : i32, i32, i32
  }
  func.func @transform_2(%arg0: i32, %arg1: i32, %arg2: i32) -> (i32, i32, i32) {
    %c1_i32 = arith.constant 1 : i32
    %0 = arith.muli %arg1, %c1_i32 : i32
    %1 = arith.addi %0, %arg2 : i32
    %c0_i32 = arith.constant 0 : i32
    %2 = arith.minsi %1, %c0_i32 : i32
    %c0_i32_0 = arith.constant 0 : i32
    %c0_i32_1 = arith.constant 0 : i32
    return %arg0, %2, %c0_i32_0 : i32, i32, i32
  }
  func.func @transform_3(%arg0: i32, %arg1: i32, %arg2: i32) -> (i32, i32, i32) {
    %c1_i32 = arith.constant 1 : i32
    %0 = arith.muli %arg1, %c1_i32 : i32
    %1 = arith.addi %0, %arg2 : i32
    %c0_i32 = arith.constant 0 : i32
    %2 = arith.minsi %1, %c0_i32 : i32
    %c0_i32_0 = arith.constant 0 : i32
    %c0_i32_1 = arith.constant 0 : i32
    return %arg0, %2, %c0_i32_0 : i32, i32, i32
  }
  func.func @transform_4(%arg0: i32, %arg1: i32, %arg2: i32) -> (i32, i32, i32, i32) {
    %c1_i32 = arith.constant 1 : i32
    %0 = arith.muli %arg0, %c1_i32 : i32
    %1 = arith.addi %0, %arg1 : i32
    %c0_i32 = arith.constant 0 : i32
    %c0_i32_0 = arith.constant 0 : i32
    %c0_i32_1 = arith.constant 0 : i32
    %c0_i32_2 = arith.constant 0 : i32
    return %1, %c0_i32, %c0_i32_0, %c0_i32_1 : i32, i32, i32, i32
  }
  func.func @transform_5(%arg0: i32, %arg1: i32, %arg2: i32) -> (i32, i32, i32, i32) {
    %c1_i32 = arith.constant 1 : i32
    %0 = arith.muli %arg0, %c1_i32 : i32
    %1 = arith.addi %0, %arg1 : i32
    %c0_i32 = arith.constant 0 : i32
    %c0_i32_0 = arith.constant 0 : i32
    %c0_i32_1 = arith.constant 0 : i32
    %c0_i32_2 = arith.constant 0 : i32
    return %1, %c0_i32, %c0_i32_0, %c0_i32_1 : i32, i32, i32, i32
  }
  func.func @transform_6(%arg0: i32, %arg1: i32, %arg2: i32) -> (i32, i32, i32, i32) {
    %c1_i32 = arith.constant 1 : i32
    %0 = arith.muli %arg0, %c1_i32 : i32
    %1 = arith.addi %0, %arg1 : i32
    %c0_i32 = arith.constant 0 : i32
    %c0_i32_0 = arith.constant 0 : i32
    %c0_i32_1 = arith.constant 0 : i32
    %c0_i32_2 = arith.constant 0 : i32
    return %1, %c0_i32, %c0_i32_0, %c0_i32_1 : i32, i32, i32, i32
  }
}

</mosaic_0001>

<llo_original>
// kernel: _multitask_stats.1
$region0: #{_multitask_stats.1}
  #allocation0 [shape = 'u32[]', space=smem, size = 0x4, offset = 0x4, fixed_abs, tag = 'smem constant byte address 0x4 - core index']
  #allocation1 [shape = 'u32[144,128]{1,0:T(1,128)}', space=vmem, size = 0x12000, scoped, tag = 'internal scratch']
  %s0 = inlined_call_operand.vmem [shape: f32[2,4,2,128], index: 0, kind: input, shape index: {}]
  %s1 = inlined_call_operand.vmem [shape: s32[2,2,128], index: 1, kind: input, shape index: {}]
  %s2 = inlined_call_operand.vmem [shape: f32[2,2,128], index: 2, kind: input, shape index: {}]
  %s3 = inlined_call_operand.vmem [shape: f32[2,2,128], index: 3, kind: input, shape index: {}]
  %s4 = inlined_call_operand.vmem [shape: f32[2,4,2,128], index: 4, kind: output, shape index: {0}]
  %s5 = inlined_call_operand.vmem [shape: f32[2,4,2,128], index: 5, kind: output, shape index: {1}]
  %s6 = inlined_call_operand.vmem [shape: f32[2,4,2,128], index: 6, kind: output, shape index: {2}]
  %7 = xla_tuple %s4, %s5, %s6
  %s8 = sld [smem:[#allocation0]]
  $region69: #{_multitask_stats.1} parent=0
    _
  %s10 = ssub.s32 1, %s8
  %s11 = scalar_select 0, %s10, %s8
  loop: start=0, step=1, limit=4
  $region2: #{_multitask_stats.1} parent=0 // loop_pre_header
    _
  $region3: #{_multitask_stats.1} parent=0 // loop_header
    %s13 = sphi 0, %s17
    %p14 = scmp.ge.s32.totalorder %s13, 4
    %s20 = sphi 0, %s39
    %s21 = sphi 0, %s35
    %s22 = sphi 0, %s31
    %s23 = sphi 0, %s20
    %s24 = sphi 0, %s21
    %s25 = sphi 0, %s22
    %s26 = sphi 0, %s23
    %s27 = sphi 0, %s24
    %s28 = sphi 0, %s25
    %s50 = sphi 0, %s52
    %s53 = sphi 0, %s50
    %s54 = sphi 0, %s53
    %s70 = sphi 0, %s54
    %s84 = sphi 0, %s86
    %s87 = sphi 0, %s84
    %s88 = sphi 0, %s87
    %s104 = sphi 0, %s88
    %s118 = sphi 0, %s120
    %s121 = sphi 0, %s118
    %s122 = sphi 0, %s121
    %s138 = sphi 0, %s122
    %s152 = sphi 0, %s154
    %s155 = sphi 0, %s152
    %s156 = sphi 0, %s155
    %s172 = sphi 0, %s156
    %s180 = sphi 0, %s182
    %s183 = sphi 0, %s180
    %s184 = sphi 0, %s183
    %s200 = sphi 0, %s184
    %s208 = sphi 0, %s210
    %s211 = sphi 0, %s208
    %s212 = sphi 0, %s211
    %s228 = sphi 0, %s212
    %s236 = sphi 0, %s238
    %s239 = sphi 0, %s236
    %s240 = sphi 0, %s239
    %s256 = sphi 0, %s240
  $region4: #{_multitask_stats.1} parent=0 // loop_header_branch
    %16 = sbr.rel (%p14) target = $region8
  $region5: #{_multitask_stats.1} parent=0 // loop_body
    %s18 = ssub.s32 %s13, 1
    %s19 = ssub.s32 %s13, 2
    %s29 = sadd.s32 1, %s22
    %p30 = scmp.ge.s32.totalorder %s29, 1
    %s31 = scalar_select %p30, 0, %s29
    %s32 = sadd.s32 1, %s21
    %s33 = scalar_select %p30, %s32, %s21
    %p34 = scmp.ge.s32.totalorder %s33, 1
    %s35 = scalar_select %p34, 0, %s33
    %s36 = sadd.s32 1, %s20
    %s37 = scalar_select %p34, %s36, %s20
    %p38 = scmp.ge.s32.totalorder %s37, 2
    %s39 = scalar_select %p38, 0, %s37
    %s40 = sadd.s32 %s21, %s22
    %p41 = scmp.lt.s32.totalorder %s40, 0
    %s42 = scalar_select %p41, %s40, 0
    %s43 = sadd.s32 %s35, %s31
    %p44 = scmp.lt.s32.totalorder %s43, 0
    %s45 = scalar_select %p44, %s43, 0
    %s46 = ssub.s32 %s20, %s39
    %s47 = ssub.s32 %s42, %s45
    %s48 = sor.u32 %s46, %s47
    %p49 = scmp.eq.s32.totalorder %s48, 0
    %s51 = sadd.s32 %s50, 1
    %s52 = scalar_select %p49, %s50, %s51
    %p55 = pneg %p49
    %p56 = scmp.eq.s32.totalorder %s13, 1
    %p57 = por %p55, %p56
    %p58 = scmp.ne.s32.totalorder %s50, %s53
    %p59 = scmp.eq.s32.totalorder %s13, 0
    %p60 = por %p58, %p59
    %p61 = scmp.ne.s32.totalorder %s50, %s53
    %p62 = scmp.eq.s32.totalorder %s18, 1
    %p63 = por %p61, %p62
    %p64 = scmp.ne.s32.totalorder %s53, %s54
    %p65 = scmp.eq.s32.totalorder %s18, 0
    %p66 = por %p64, %p65
    %p67 = scmp.ne.s32.totalorder %s53, %s54
    %p68 = scmp.eq.s32.totalorder %s19, 1
    %p69 = por %p67, %p68
    %p71 = scmp.ne.s32.totalorder %s54, %s70
    %p72 = scmp.eq.s32.totalorder %s19, 0
    %p73 = por %p71, %p72
    %s74 = sadd.s32 %s21, %s22
    %p75 = scmp.lt.s32.totalorder %s74, 0
    %s76 = scalar_select %p75, %s74, 0
    %s77 = sadd.s32 %s35, %s31
    %p78 = scmp.lt.s32.totalorder %s77, 0
    %s79 = scalar_select %p78, %s77, 0
    %s80 = ssub.s32 %s20, %s39
    %s81 = ssub.s32 %s76, %s79
    %s82 = sor.u32 %s80, %s81
    %p83 = scmp.eq.s32.totalorder %s82, 0
    %s85 = sadd.s32 %s84, 1
    %s86 = scalar_select %p83, %s84, %s85
    %p89 = pneg %p83
    %p90 = scmp.eq.s32.totalorder %s13, 1
    %p91 = por %p89, %p90
    %p92 = scmp.ne.s32.totalorder %s84, %s87
    %p93 = scmp.eq.s32.totalorder %s13, 0
    %p94 = por %p92, %p93
    %p95 = scmp.ne.s32.totalorder %s84, %s87
    %p96 = scmp.eq.s32.totalorder %s18, 1
    %p97 = por %p95, %p96
    %p98 = scmp.ne.s32.totalorder %s87, %s88
    %p99 = scmp.eq.s32.totalorder %s18, 0
    %p100 = por %p98, %p99
    %p101 = scmp.ne.s32.totalorder %s87, %s88
    %p102 = scmp.eq.s32.totalorder %s19, 1
    %p103 = por %p101, %p102
    %p105 = scmp.ne.s32.totalorder %s88, %s104
    %p106 = scmp.eq.s32.totalorder %s19, 0
    %p107 = por %p105, %p106
    %s108 = sadd.s32 %s21, %s22
    %p109 = scmp.lt.s32.totalorder %s108, 0
    %s110 = scalar_select %p109, %s108, 0
    %s111 = sadd.s32 %s35, %s31
    %p112 = scmp.lt.s32.totalorder %s111, 0
    %s113 = scalar_select %p112, %s111, 0
    %s114 = ssub.s32 %s20, %s39
    %s115 = ssub.s32 %s110, %s113
    %s116 = sor.u32 %s114, %s115
    %p117 = scmp.eq.s32.totalorder %s116, 0
    %s119 = sadd.s32 %s118, 1
    %s120 = scalar_select %p117, %s118, %s119
    %p123 = pneg %p117
    %p124 = scmp.eq.s32.totalorder %s13, 1
    %p125 = por %p123, %p124
    %p126 = scmp.ne.s32.totalorder %s118, %s121
    %p127 = scmp.eq.s32.totalorder %s13, 0
    %p128 = por %p126, %p127
    %p129 = scmp.ne.s32.totalorder %s118, %s121
    %p130 = scmp.eq.s32.totalorder %s18, 1
    %p131 = por %p129, %p130
    %p132 = scmp.ne.s32.totalorder %s121, %s122
    %p133 = scmp.eq.s32.totalorder %s18, 0
    %p134 = por %p132, %p133
    %p135 = scmp.ne.s32.totalorder %s121, %s122
    %p136 = scmp.eq.s32.totalorder %s19, 1
    %p137 = por %p135, %p136
    %p139 = scmp.ne.s32.totalorder %s122, %s138
    %p140 = scmp.eq.s32.totalorder %s19, 0
    %p141 = por %p139, %p140
    %s142 = sadd.s32 %s21, %s22
    %p143 = scmp.lt.s32.totalorder %s142, 0
    %s144 = scalar_select %p143, %s142, 0
    %s145 = sadd.s32 %s35, %s31
    %p146 = scmp.lt.s32.totalorder %s145, 0
    %s147 = scalar_select %p146, %s145, 0
    %s148 = ssub.s32 %s20, %s39
    %s149 = ssub.s32 %s144, %s147
    %s150 = sor.u32 %s148, %s149
    %p151 = scmp.eq.s32.totalorder %s150, 0
    %s153 = sadd.s32 %s152, 1
    %s154 = scalar_select %p151, %s152, %s153
    %p157 = pneg %p151
    %p158 = scmp.eq.s32.totalorder %s13, 1
    %p159 = por %p157, %p158
    %p160 = scmp.ne.s32.totalorder %s152, %s155
    %p161 = scmp.eq.s32.totalorder %s13, 0
    %p162 = por %p160, %p161
    %p163 = scmp.ne.s32.totalorder %s152, %s155
    %p164 = scmp.eq.s32.totalorder %s18, 1
    %p165 = por %p163, %p164
    %p166 = scmp.ne.s32.totalorder %s155, %s156
    %p167 = scmp.eq.s32.totalorder %s18, 0
    %p168 = por %p166, %p167
    %p169 = scmp.ne.s32.totalorder %s155, %s156
    %p170 = scmp.eq.s32.totalorder %s19, 1
    %p171 = por %p169, %p170
    %p173 = scmp.ne.s32.totalorder %s156, %s172
    %p174 = scmp.eq.s32.totalorder %s19, 0
    %p175 = por %p173, %p174
    %s176 = sadd.s32 %s20, %s21
    %s177 = sadd.s32 %s39, %s35
    %s178 = ssub.s32 %s176, %s177
    %p179 = scmp.eq.s32.totalorder %s178, 0
    %s181 = sadd.s32 %s180, 1
    %s182 = scalar_select %p179, %s180, %s181
    %p185 = pneg %p179
    %p186 = scmp.eq.s32.totalorder %s13, 1
    %p187 = por %p185, %p186
    %p188 = scmp.ne.s32.totalorder %s180, %s183
    %p189 = scmp.eq.s32.totalorder %s13, 0
    %p190 = por %p188, %p189
    %p191 = scmp.ne.s32.totalorder %s180, %s183
    %p192 = scmp.eq.s32.totalorder %s18, 1
    %p193 = por %p191, %p192
    %p194 = scmp.ne.s32.totalorder %s183, %s184
    %p195 = scmp.eq.s32.totalorder %s18, 0
    %p196 = por %p194, %p195
    %p197 = scmp.ne.s32.totalorder %s183, %s184
    %p198 = scmp.eq.s32.totalorder %s19, 1
    %p199 = por %p197, %p198
    %p201 = scmp.ne.s32.totalorder %s184, %s200
    %p202 = scmp.eq.s32.totalorder %s19, 0
    %p203 = por %p201, %p202
    %s204 = sadd.s32 %s20, %s21
    %s205 = sadd.s32 %s39, %s35
    %s206 = ssub.s32 %s204, %s205
    %p207 = scmp.eq.s32.totalorder %s206, 0
    %s209 = sadd.s32 %s208, 1
    %s210 = scalar_select %p207, %s208, %s209
    %p213 = pneg %p207
    %p214 = scmp.eq.s32.totalorder %s13, 1
    %p215 = por %p213, %p214
    %p216 = scmp.ne.s32.totalorder %s208, %s211
    %p217 = scmp.eq.s32.totalorder %s13, 0
    %p218 = por %p216, %p217
    %p219 = scmp.ne.s32.totalorder %s208, %s211
    %p220 = scmp.eq.s32.totalorder %s18, 1
    %p221 = por %p219, %p220
    %p222 = scmp.ne.s32.totalorder %s211, %s212
    %p223 = scmp.eq.s32.totalorder %s18, 0
    %p224 = por %p222, %p223
    %p225 = scmp.ne.s32.totalorder %s211, %s212
    %p226 = scmp.eq.s32.totalorder %s19, 1
    %p227 = por %p225, %p226
    %p229 = scmp.ne.s32.totalorder %s212, %s228
    %p230 = scmp.eq.s32.totalorder %s19, 0
    %p231 = por %p229, %p230
    %s232 = sadd.s32 %s20, %s21
    %s233 = sadd.s32 %s39, %s35
    %s234 = ssub.s32 %s232, %s233
    %p235 = scmp.eq.s32.totalorder %s234, 0
    %s237 = sadd.s32 %s236, 1
    %s238 = scalar_select %p235, %s236, %s237
    %p241 = pneg %p235
    %p242 = scmp.eq.s32.totalorder %s13, 1
    %p243 = por %p241, %p242
    %p244 = scmp.ne.s32.totalorder %s236, %s239
    %p245 = scmp.eq.s32.totalorder %s13, 0
    %p246 = por %p244, %p245
    %p247 = scmp.ne.s32.totalorder %s236, %s239
    %p248 = scmp.eq.s32.totalorder %s18, 1
    %p249 = por %p247, %p248
    %p250 = scmp.ne.s32.totalorder %s239, %s240
    %p251 = scmp.eq.s32.totalorder %s18, 0
    %p252 = por %p250, %p251
    %p253 = scmp.ne.s32.totalorder %s239, %s240
    %p254 = scmp.eq.s32.totalorder %s19, 1
    %p255 = por %p253, %p254
    %p257 = scmp.ne.s32.totalorder %s240, %s256
    %p258 = scmp.eq.s32.totalorder %s19, 0
    %p259 = por %p257, %p258
    %p260 = scmp.le.s32.totalorder 1, %s13
    %p261 = scmp.lt.s32.totalorder %s13, 3
    %p262 = pnand %p260, %p261
    %p263 = pneg %p262
    // Predicated region
    $region9: #{_multitask_stats.1} parent=5 // pred_check
      _
    $region10: #{_multitask_stats.1} parent=5 // pred_check_branch
      %265 = sbr.rel (%p262) target = $region12
    $region11: #{_multitask_stats.1} parent=5 // pred_region
      %s266 = ssub.s32 %s13, 1
    $region12: #{_multitask_stats.1} parent=5 // pred_fallthru
      _
    %p267 = scmp.lt.s32.totalorder %s13, 2
    // Predicated region
    $region13: #{_multitask_stats.1} parent=5 // pred_check
      %p268 = pneg %p267
    $region14: #{_multitask_stats.1} parent=5 // pred_check_branch
      %270 = sbr.rel (%p268) target = $region16
    $region15: #{_multitask_stats.1} parent=5 // pred_region
      // Predicated region
      $region17: #{_multitask_stats.1} parent=15 // pred_check
        %p271 = pneg %p60
      $region18: #{_multitask_stats.1} parent=15 // pred_check_branch
        %273 = sbr.rel (%p271) target = $region20
      $region19: #{_multitask_stats.1} parent=15 // pred_region
        %s274 = sadd.s32 %s21, %s22
        %p275 = scmp.lt.s32.totalorder %s274, 0
        %s276 = scalar_select %p275, %s274, 0
        %p277 = scmp.lt.s32.totalorder %s20, 1
        %s278 = scalar_select %p277, %s20, 1
        %p279 = scmp.lt.s32.totalorder %s276, 0
        %s280 = scalar_select %p279, %s276, 0
        %s281 = smul.addr %s278, 4
        %s282 = sadd.s32 %s280, %s281
        %s283 = smul.addr %s282, 2
        %s284 = scalar_lea.vmem %s0, %s283
        %s285 = sadd.s32 %s21, %s22
        %p286 = scmp.lt.s32.totalorder %s285, 0
        %s287 = scalar_select %p286, %s285, 0
      $region20: #{_multitask_stats.1} parent=15 // pred_fallthru
        _
      // Predicated region
      $region21: #{_multitask_stats.1} parent=15 // pred_check
        %p288 = pneg %p94
      $region22: #{_multitask_stats.1} parent=15 // pred_check_branch
        %290 = sbr.rel (%p288) target = $region24
      $region23: #{_multitask_stats.1} parent=15 // pred_region
        %s291 = sadd.s32 %s21, %s22
        %p292 = scmp.lt.s32.totalorder %s291, 0
        %s293 = scalar_select %p292, %s291, 0
        %p294 = scmp.lt.s32.totalorder %s20, 1
        %s295 = scalar_select %p294, %s20, 1
        %p296 = scmp.lt.s32.totalorder %s293, 0
        %s297 = scalar_select %p296, %s293, 0
        %s298 = sadd.s32 %s297, %s295
        %s299 = smul.addr %s298, 2
        %s300 = scalar_lea.vmem %s1, %s299
        %s301 = sadd.s32 %s21, %s22
        %p302 = scmp.lt.s32.totalorder %s301, 0
        %s303 = scalar_select %p302, %s301, 0
      $region24: #{_multitask_stats.1} parent=15 // pred_fallthru
        _
      // Predicated region
      $region25: #{_multitask_stats.1} parent=15 // pred_check
        %p304 = pneg %p128
      $region26: #{_multitask_stats.1} parent=15 // pred_check_branch
        %306 = sbr.rel (%p304) target = $region28
      $region27: #{_multitask_stats.1} parent=15 // pred_region
        %s307 = sadd.s32 %s21, %s22
        %p308 = scmp.lt.s32.totalorder %s307, 0
        %s309 = scalar_select %p308, %s307, 0
        %p310 = scmp.lt.s32.totalorder %s20, 1
        %s311 = scalar_select %p310, %s20, 1
        %p312 = scmp.lt.s32.totalorder %s309, 0
        %s313 = scalar_select %p312, %s309, 0
        %s314 = sadd.s32 %s313, %s311
        %s315 = smul.addr %s314, 2
        %s316 = scalar_lea.vmem %s2, %s315
        %s317 = sadd.s32 %s21, %s22
        %p318 = scmp.lt.s32.totalorder %s317, 0
        %s319 = scalar_select %p318, %s317, 0
      $region28: #{_multitask_stats.1} parent=15 // pred_fallthru
        _
      // Predicated region
      $region29: #{_multitask_stats.1} parent=15 // pred_check
        %p320 = pneg %p162
      $region30: #{_multitask_stats.1} parent=15 // pred_check_branch
        %322 = sbr.rel (%p320) target = $region32
      $region31: #{_multitask_stats.1} parent=15 // pred_region
        %s323 = sadd.s32 %s21, %s22
        %p324 = scmp.lt.s32.totalorder %s323, 0
        %s325 = scalar_select %p324, %s323, 0
        %p326 = scmp.lt.s32.totalorder %s20, 1
        %s327 = scalar_select %p326, %s20, 1
        %p328 = scmp.lt.s32.totalorder %s325, 0
        %s329 = scalar_select %p328, %s325, 0
        %s330 = sadd.s32 %s329, %s327
        %s331 = smul.addr %s330, 2
        %s332 = scalar_lea.vmem %s3, %s331
        %s333 = sadd.s32 %s21, %s22
        %p334 = scmp.lt.s32.totalorder %s333, 0
        %s335 = scalar_select %p334, %s333, 0
      $region32: #{_multitask_stats.1} parent=15 // pred_fallthru
        _
    $region16: #{_multitask_stats.1} parent=5 // pred_fallthru
      _
    %p336 = scmp.le.s32.totalorder 1, %s13
    %p337 = scmp.lt.s32.totalorder %s13, 3
    %p338 = pnand %p336, %p337
    %p339 = pneg %p338
    // Predicated region
    $region33: #{_multitask_stats.1} parent=5 // pred_check
      _
    $region34: #{_multitask_stats.1} parent=5 // pred_check_branch
      %341 = sbr.rel (%p338) target = $region36
    $region35: #{_multitask_stats.1} parent=5 // pred_region
      %s342 = ssub.s32 %s13, 1
      %s343 = sadd.s32 %s24, %s25
      %p344 = scmp.lt.s32.totalorder %s343, 0
      %s345 = scalar_select %p344, %s343, 0
      %p346 = scmp.lt.s32.totalorder %s23, 1
      %s347 = scalar_select %p346, %s23, 1
      %p348 = scmp.lt.s32.totalorder %s345, 0
      %s349 = scalar_select %p348, %s345, 0
      %s350 = smul.addr %s347, 4
      %s351 = sadd.s32 %s349, %s350
      %s352 = smul.addr %s351, 2
      %s353 = scalar_lea.vmem %s0, %s352
      %p354 = pneg %p66
      %p355 = pneg %p63
      %s356 = sadd.s32 %s24, %s25
      %p357 = scmp.lt.s32.totalorder %s356, 0
      %s358 = scalar_select %p357, %s356, 0
      %p359 = scmp.lt.s32.totalorder %s23, 1
      %s360 = scalar_select %p359, %s23, 1
      %p361 = scmp.lt.s32.totalorder %s358, 0
      %s362 = scalar_select %p361, %s358, 0
      %s363 = sadd.s32 %s362, %s360
      %s364 = smul.addr %s363, 2
      %s365 = scalar_lea.vmem %s1, %s364
      %p366 = pneg %p100
      %p367 = pneg %p97
      %s368 = sadd.s32 %s24, %s25
      %p369 = scmp.lt.s32.totalorder %s368, 0
      %s370 = scalar_select %p369, %s368, 0
      %p371 = scmp.lt.s32.totalorder %s23, 1
      %s372 = scalar_select %p371, %s23, 1
      %p373 = scmp.lt.s32.totalorder %s370, 0
      %s374 = scalar_select %p373, %s370, 0
      %s375 = sadd.s32 %s374, %s372
      %s376 = smul.addr %s375, 2
      %s377 = scalar_lea.vmem %s2, %s376
      %p378 = pneg %p134
      %p379 = pneg %p131
      %s380 = sadd.s32 %s24, %s25
      %p381 = scmp.lt.s32.totalorder %s380, 0
      %s382 = scalar_select %p381, %s380, 0
      %p383 = scmp.lt.s32.totalorder %s23, 1
      %s384 = scalar_select %p383, %s23, 1
      %p385 = scmp.lt.s32.totalorder %s382, 0
      %s386 = scalar_select %p385, %s382, 0
      %s387 = sadd.s32 %s386, %s384
      %s388 = smul.addr %s387, 2
      %s389 = scalar_lea.vmem %s3, %s388
      %p390 = pneg %p168
      %p391 = pneg %p165
      %p392 = pneg %p196
      %p393 = pneg %p193
      %s394 = sadd.s32 %s23, %s24
      %p395 = scmp.lt.s32.totalorder %s394, 1
      %s396 = scalar_select %p395, %s394, 1
      %s397 = smul.addr %s396, 4
      %s398 = smul.addr %s397, 2
      %s399 = scalar_lea.vmem %s4, %s398
      %p400 = pneg %p224
      %p401 = pneg %p221
      %s402 = sadd.s32 %s23, %s24
      %p403 = scmp.lt.s32.totalorder %s402, 1
      %s404 = scalar_select %p403, %s402, 1
      %s405 = smul.addr %s404, 4
      %s406 = smul.addr %s405, 2
      %s407 = scalar_lea.vmem %s5, %s406
      %p408 = pneg %p252
      %p409 = pneg %p249
      %s410 = sadd.s32 %s23, %s24
      %p411 = scmp.lt.s32.totalorder %s410, 1
      %s412 = scalar_select %p411, %s410, 1
      %s413 = smul.addr %s412, 4
      %s414 = smul.addr %s413, 2
      %s415 = scalar_lea.vmem %s6, %s414
      %s416 = sadd.s32 %s24, %s25
      %p417 = scmp.lt.s32.totalorder %s416, 0
      %s418 = scalar_select %p417, %s416, 0
      %p419 = scmp.lt.s32.totalorder %s23, 1
      %s420 = scalar_select %p419, %s23, 1
      %p421 = scmp.lt.s32.totalorder %s418, 0
      %s422 = scalar_select %p421, %s418, 0
      %s423 = smul.addr %s420, 4
      %s424 = sadd.s32 %s422, %s423
      %s425 = smul.addr %s424, 2
      %s426 = scalar_lea.vmem %s0, %s425
      %s427 = sadd.s32 %s24, %s25
      %p428 = scmp.lt.s32.totalorder %s427, 0
      %s429 = scalar_select %p428, %s427, 0
      %s430 = sadd.s32 %s24, %s25
      %p431 = scmp.lt.s32.totalorder %s430, 0
      %s432 = scalar_select %p431, %s430, 0
      %p433 = scmp.lt.s32.totalorder %s23, 1
      %s434 = scalar_select %p433, %s23, 1
      %p435 = scmp.lt.s32.totalorder %s432, 0
      %s436 = scalar_select %p435, %s432, 0
      %s437 = sadd.s32 %s436, %s434
      %s438 = smul.addr %s437, 2
      %s439 = scalar_lea.vmem %s1, %s438
      %s440 = sadd.s32 %s24, %s25
      %p441 = scmp.lt.s32.totalorder %s440, 0
      %s442 = scalar_select %p441, %s440, 0
      %s443 = sadd.s32 %s24, %s25
      %p444 = scmp.lt.s32.totalorder %s443, 0
      %s445 = scalar_select %p444, %s443, 0
      %p446 = scmp.lt.s32.totalorder %s23, 1
      %s447 = scalar_select %p446, %s23, 1
      %p448 = scmp.lt.s32.totalorder %s445, 0
      %s449 = scalar_select %p448, %s445, 0
      %s450 = sadd.s32 %s449, %s447
      %s451 = smul.addr %s450, 2
      %s452 = scalar_lea.vmem %s2, %s451
      %s453 = sadd.s32 %s24, %s25
      %p454 = scmp.lt.s32.totalorder %s453, 0
      %s455 = scalar_select %p454, %s453, 0
      %s456 = sadd.s32 %s24, %s25
      %p457 = scmp.lt.s32.totalorder %s456, 0
      %s458 = scalar_select %p457, %s456, 0
      %p459 = scmp.lt.s32.totalorder %s23, 1
      %s460 = scalar_select %p459, %s23, 1
      %p461 = scmp.lt.s32.totalorder %s458, 0
      %s462 = scalar_select %p461, %s458, 0
      %s463 = sadd.s32 %s462, %s460
      %s464 = smul.addr %s463, 2
      %s465 = scalar_lea.vmem %s3, %s464
      %s466 = sadd.s32 %s24, %s25
      %p467 = scmp.lt.s32.totalorder %s466, 0
      %s468 = scalar_select %p467, %s466, 0
      %s469 = sadd.s32 %s23, %s24
      %p470 = scmp.lt.s32.totalorder %s469, 1
      %s471 = scalar_select %p470, %s469, 1
      %s472 = smul.addr %s471, 4
      %s473 = smul.addr %s472, 2
      %s474 = scalar_lea.vmem %s4, %s473
      %s475 = sadd.s32 %s23, %s24
      %s476 = sadd.s32 %s23, %s24
      %p477 = scmp.lt.s32.totalorder %s476, 1
      %s478 = scalar_select %p477, %s476, 1
      %s479 = smul.addr %s478, 4
      %s480 = smul.addr %s479, 2
      %s481 = scalar_lea.vmem %s5, %s480
      %s482 = sadd.s32 %s23, %s24
      %s483 = sadd.s32 %s23, %s24
      %p484 = scmp.lt.s32.totalorder %s483, 1
      %s485 = scalar_select %p484, %s483, 1
      %s486 = smul.addr %s485, 4
      %s487 = smul.addr %s486, 2
      %s488 = scalar_lea.vmem %s6, %s487
      %s489 = sadd.s32 %s23, %s24
      %p490 = scmp.eq.s32.totalorder %s25, 0
      // Predicated region
      $region37: #{_multitask_stats.1} parent=35 // pred_check
        %p491 = pneg %p490
      $region38: #{_multitask_stats.1} parent=35 // pred_check_branch
        %493 = sbr.rel (%p491) target = $region40
      $region39: #{_multitask_stats.1} parent=35 // pred_region
        %494 = vst [vmem:[%s474] sm:$0x3] 0.0
        %495 = vst [vmem:[%s474 + $0x2] sm:$0x3] 0.0
        %496 = vst [vmem:[%s474 + $0x4] sm:$0x3] 0.0
        %497 = vst [vmem:[%s474 + $0x6] sm:$0x3] 0.0
        %498 = vst [vmem:[%s481] sm:$0x3] 0.0
        %499 = vst [vmem:[%s481 + $0x2] sm:$0x3] 0.0
        %500 = vst [vmem:[%s481 + $0x4] sm:$0x3] 0.0
        %501 = vst [vmem:[%s481 + $0x6] sm:$0x3] 0.0
        %502 = vst [vmem:[%s488] sm:$0x3] 0.0
        %503 = vst [vmem:[%s488 + $0x2] sm:$0x3] 0.0
        %504 = vst [vmem:[%s488 + $0x4] sm:$0x3] 0.0
        %505 = vst [vmem:[%s488 + $0x6] sm:$0x3] 0.0
      $region40: #{_multitask_stats.1} parent=35 // pred_fallthru
        _
      %v506 = vld [vmem:[%s439] sm:$0x3]
      %s507 = sadd.s32 %s24, %s25
      %s508 = smul.u32 %s507, 2
      %v509 = vlaneseq
      %v510 = vshrl.u32 %v509, 7
      %v511 = vstv %s508
      %v512 = vadd.s32 %v511, %v510
      %v513 = vlaneseq
      %v514 = vand.u32 %v513, 127
      %v515 = vmul.u32 %v512, 128
      %v516 = vadd.s32 %v515, %v514
      %vm517 = vcmp.lt.s32.totalorder %v516, 256
      %v518 = vld [vmem:[%s426] sm:$0x3]
      %vm519 = vcmp.eq.s32.totalorder %v506, 0
      %v520 = vsel %vm519, %v518, 0.0
      %s521 = scalar_lea.vmem %s426, 2
      %v522 = vld [vmem:[%s521] sm:$0x3]
      %vm523 = vcmp.gt.f32.partialorder %v522, %v518
      %v524 = vsel %vm523, 1, 0
      %v525 = vsel %vm523, %v522, %v518
      %vm526 = vcmp.eq.s32.totalorder %v506, 1
      %v527 = vsel %vm526, %v522, %v520
      %s528 = scalar_lea.vmem %s426, 4
      %v529 = vld [vmem:[%s528] sm:$0x3]
      %vm530 = vcmp.gt.f32.partialorder %v529, %v525
      %v531 = vsel %vm530, 2, %v524
      %v532 = vsel %vm530, %v529, %v525
      %vm533 = vcmp.eq.s32.totalorder %v506, 2
      %v534 = vsel %vm533, %v529, %v527
      %s535 = scalar_lea.vmem %s426, 6
      %v536 = vld [vmem:[%s535] sm:$0x3]
      %vm537 = vcmp.gt.f32.partialorder %v536, %v532
      %v538 = vsel %vm537, 3, %v531
      %v539 = vsel %vm537, %v536, %v532
      %vm540 = vcmp.eq.s32.totalorder %v506, 3
      %v541 = vsel %vm540, %v536, %v534
      %v542 = vsub.f32 %v518, %v539
      %v543 = vmul.f32 %v542, 1.442695
      %v544 = vpow.pop %v543
      %v545 = vadd.f32 %v544, 0.0
      %v546 = vsub.f32 %v522, %v539
      %v547 = vmul.f32 %v546, 1.442695
      %v548 = vpow.pop %v547
      %v549 = vadd.f32 %v545, %v548
      %v550 = vsub.f32 %v529, %v539
      %v551 = vmul.f32 %v550, 1.442695
      %v552 = vpow.pop %v551
      %v553 = vadd.f32 %v549, %v552
      %v554 = vsub.f32 %v536, %v539
      %v555 = vmul.f32 %v554, 1.442695
      %v556 = vpow.pop %v555
      %v557 = vadd.f32 %v553, %v556
      %v558 = vlog2.pop %v557
      %v559 = vmul.f32 %v558, 0.6931472
      %v560 = vadd.f32 %v539, %v559
      %v561 = vsub.f32 %v560, %v541
      %v562 = vld [vmem:[%s452] sm:$0x3]
      %v563 = vld [vmem:[%s465] sm:$0x3]
      %v564 = vsub.f32 %v562, %v563
      %v565 = vand.u32 2147483647, %v564
      %vm566 = vcmp.eq.s32.totalorder %v538, 0
      %vm567 = vmand %vm566, %vm517
      %v568 = vld [vmem:[%s474] sm:$0x3]
      %v569 = vsel %vm567, 1.0, 0.0
      %v570 = vadd.f32 %v569, 0.0
      %v571 = vadd.f32 %v568, %v570
      %572 = vst [vmem:[%s474] sm:$0x3] %v571
      %v573 = vld [vmem:[%s481] sm:$0x3]
      %v574 = vsel %vm567, %v561, 0.0
      %v575 = vadd.f32 %v574, 0.0
      %v576 = vadd.f32 %v573, %v575
      %577 = vst [vmem:[%s481] sm:$0x3] %v576
      %v578 = vld [vmem:[%s488] sm:$0x3]
      %v579 = vsel %vm567, %v565, 0.0
      %v580 = vadd.f32 %v579, 0.0
      %v581 = vadd.f32 %v578, %v580
      %582 = vst [vmem:[%s488] sm:$0x3] %v581
      %vm583 = vcmp.eq.s32.totalorder %v538, 1
      %vm584 = vmand %vm583, %vm517
      %s585 = scalar_lea.vmem %s474, 2
      %v586 = vld [vmem:[%s585] sm:$0x3]
      %v587 = vsel %vm584, 1.0, 0.0
      %v588 = vadd.f32 %v587, 0.0
      %v589 = vadd.f32 %v586, %v588
      %590 = vst [vmem:[%s585] sm:$0x3] %v589
      %s591 = scalar_lea.vmem %s481, 2
      %v592 = vld [vmem:[%s591] sm:$0x3]
      %v593 = vsel %vm584, %v561, 0.0
      %v594 = vadd.f32 %v593, 0.0
      %v595 = vadd.f32 %v592, %v594
      %596 = vst [vmem:[%s591] sm:$0x3] %v595
      %s597 = scalar_lea.vmem %s488, 2
      %v598 = vld [vmem:[%s597] sm:$0x3]
      %v599 = vsel %vm584, %v565, 0.0
      %v600 = vadd.f32 %v599, 0.0
      %v601 = vadd.f32 %v598, %v600
      %602 = vst [vmem:[%s597] sm:$0x3] %v601
      %vm603 = vcmp.eq.s32.totalorder %v538, 2
      %vm604 = vmand %vm603, %vm517
      %s605 = scalar_lea.vmem %s474, 4
      %v606 = vld [vmem:[%s605] sm:$0x3]
      %v607 = vsel %vm604, 1.0, 0.0
      %v608 = vadd.f32 %v607, 0.0
      %v609 = vadd.f32 %v606, %v608
      %610 = vst [vmem:[%s605] sm:$0x3] %v609
      %s611 = scalar_lea.vmem %s481, 4
      %v612 = vld [vmem:[%s611] sm:$0x3]
      %v613 = vsel %vm604, %v561, 0.0
      %v614 = vadd.f32 %v613, 0.0
      %v615 = vadd.f32 %v612, %v614
      %616 = vst [vmem:[%s611] sm:$0x3] %v615
      %s617 = scalar_lea.vmem %s488, 4
      %v618 = vld [vmem:[%s617] sm:$0x3]
      %v619 = vsel %vm604, %v565, 0.0
      %v620 = vadd.f32 %v619, 0.0
      %v621 = vadd.f32 %v618, %v620
      %622 = vst [vmem:[%s617] sm:$0x3] %v621
      %vm623 = vcmp.eq.s32.totalorder %v538, 3
      %vm624 = vmand %vm623, %vm517
      %s625 = scalar_lea.vmem %s474, 6
      %v626 = vld [vmem:[%s625] sm:$0x3]
      %v627 = vsel %vm624, 1.0, 0.0
      %v628 = vadd.f32 %v627, 0.0
      %v629 = vadd.f32 %v626, %v628
      %630 = vst [vmem:[%s625] sm:$0x3] %v629
      %s631 = scalar_lea.vmem %s481, 6
      %v632 = vld [vmem:[%s631] sm:$0x3]
      %v633 = vsel %vm624, %v561, 0.0
      %v634 = vadd.f32 %v633, 0.0
      %v635 = vadd.f32 %v632, %v634
      %636 = vst [vmem:[%s631] sm:$0x3] %v635
      %s637 = scalar_lea.vmem %s488, 6
      %v638 = vld [vmem:[%s637] sm:$0x3]
      %v639 = vsel %vm624, %v565, 0.0
      %v640 = vadd.f32 %v639, 0.0
      %v641 = vadd.f32 %v638, %v640
      %642 = vst [vmem:[%s637] sm:$0x3] %v641
      %s643 = sadd.s32 %s23, %s24
      %p644 = scmp.lt.s32.totalorder %s643, 1
      %s645 = scalar_select %p644, %s643, 1
      %s646 = smul.addr %s645, 4
      %s647 = smul.addr %s646, 2
      %s648 = scalar_lea.vmem %s4, %s647
      %s649 = sadd.s32 %s23, %s24
      %p650 = scmp.lt.s32.totalorder %s649, 1
      %s651 = scalar_select %p650, %s649, 1
      %s652 = smul.addr %s651, 4
      %s653 = smul.addr %s652, 2
      %s654 = scalar_lea.vmem %s5, %s653
      %s655 = sadd.s32 %s23, %s24
      %p656 = scmp.lt.s32.totalorder %s655, 1
      %s657 = scalar_select %p656, %s655, 1
      %s658 = smul.addr %s657, 4
      %s659 = smul.addr %s658, 2
      %s660 = scalar_lea.vmem %s6, %s659
      // Predicated region
      $region41: #{_multitask_stats.1} parent=35 // pred_check
        %p661 = pneg %p193
      $region42: #{_multitask_stats.1} parent=35 // pred_check_branch
        %663 = sbr.rel (%p661) target = $region44
      $region43: #{_multitask_stats.1} parent=35 // pred_region
        %s664 = sadd.s32 %s23, %s24
      $region44: #{_multitask_stats.1} parent=35 // pred_fallthru
        _
      // Predicated region
      $region45: #{_multitask_stats.1} parent=35 // pred_check
        %p665 = pneg %p221
      $region46: #{_multitask_stats.1} parent=35 // pred_check_branch
        %667 = sbr.rel (%p665) target = $region48
      $region47: #{_multitask_stats.1} parent=35 // pred_region
        %s668 = sadd.s32 %s23, %s24
      $region48: #{_multitask_stats.1} parent=35 // pred_fallthru
        _
      // Predicated region
      $region49: #{_multitask_stats.1} parent=35 // pred_check
        %p669 = pneg %p249
      $region50: #{_multitask_stats.1} parent=35 // pred_check_branch
        %671 = sbr.rel (%p669) target = $region52
      $region51: #{_multitask_stats.1} parent=35 // pred_region
        %s672 = sadd.s32 %s23, %s24
      $region52: #{_multitask_stats.1} parent=35 // pred_fallthru
        _
    $region36: #{_multitask_stats.1} parent=5 // pred_fallthru
      _
    %p673 = scmp.le.s32.totalorder 2, %s13
    // Predicated region
    $region53: #{_multitask_stats.1} parent=5 // pred_check
      %p674 = pneg %p673
    $region54: #{_multitask_stats.1} parent=5 // pred_check_branch
      %676 = sbr.rel (%p674) target = $region56
    $region55: #{_multitask_stats.1} parent=5 // pred_region
      %s677 = ssub.s32 %s13, 2
      // Predicated region
      $region57: #{_multitask_stats.1} parent=55 // pred_check
        %p678 = pneg %p199
      $region58: #{_multitask_stats.1} parent=55 // pred_check_branch
        %680 = sbr.rel (%p678) target = $region60
      $region59: #{_multitask_stats.1} parent=55 // pred_region
        %s681 = sadd.s32 %s26, %s27
        %p682 = scmp.lt.s32.totalorder %s681, 1
        %s683 = scalar_select %p682, %s681, 1
        %s684 = smul.addr %s683, 4
        %s685 = smul.addr %s684, 2
        %s686 = scalar_lea.vmem %s4, %s685
      $region60: #{_multitask_stats.1} parent=55 // pred_fallthru
        _
      // Predicated region
      $region61: #{_multitask_stats.1} parent=55 // pred_check
        %p687 = pneg %p227
      $region62: #{_multitask_stats.1} parent=55 // pred_check_branch
        %689 = sbr.rel (%p687) target = $region64
      $region63: #{_multitask_stats.1} parent=55 // pred_region
        %s690 = sadd.s32 %s26, %s27
        %p691 = scmp.lt.s32.totalorder %s690, 1
        %s692 = scalar_select %p691, %s690, 1
        %s693 = smul.addr %s692, 4
        %s694 = smul.addr %s693, 2
        %s695 = scalar_lea.vmem %s5, %s694
      $region64: #{_multitask_stats.1} parent=55 // pred_fallthru
        _
      // Predicated region
      $region65: #{_multitask_stats.1} parent=55 // pred_check
        %p696 = pneg %p255
      $region66: #{_multitask_stats.1} parent=55 // pred_check_branch
        %698 = sbr.rel (%p696) target = $region68
      $region67: #{_multitask_stats.1} parent=55 // pred_region
        %s699 = sadd.s32 %s26, %s27
        %p700 = scmp.lt.s32.totalorder %s699, 1
        %s701 = scalar_select %p700, %s699, 1
        %s702 = smul.addr %s701, 4
        %s703 = smul.addr %s702, 2
        %s704 = scalar_lea.vmem %s6, %s703
      $region68: #{_multitask_stats.1} parent=55 // pred_fallthru
        _
    $region56: #{_multitask_stats.1} parent=5 // pred_fallthru
      _
  $region6: #{_multitask_stats.1} parent=0 // loop_footer
    %s17 = sadd.s32 1, %s13
  $region7: #{_multitask_stats.1} parent=0 // loop_footer_branch
    %12 = sbr.rel target = $region3
  $region8: #{_multitask_stats.1} parent=0 // loop_exit
    _

</llo_original>
